<compile_context>
chip_gen: v5e
topology: v5e:2x2
jax: 0.10.0
libtpu: 0.0.40
codegen_flags: <defaults>
</compile_context>

<pallas_src>
import functools

import jax
import jax.numpy as jnp
from jax import lax
from jax.experimental import pallas as pl
from jax.experimental.pallas import tpu as pltpu

INPUT_DIM = 32
H1 = 64
H2 = 32
OUT = 1


def mlp_kernel(x_ref, w1_ref, b1_ref, w2_ref, b2_ref, w3_ref, b3_ref, o_ref,
               *, ep_dtype):
    # x block arrives in natural (TILE_B, 32) f32 layout; cast once to bf16.
    x = x_ref[...].astype(jnp.bfloat16)                      # (TILE_B, 32)

    # Layer 1: Linear(32 -> 64) + ReLU.  Contract the feature axis of BOTH
    # W1 (64, 32) and x (TILE_B, 32) -> (64, TILE_B): batch rows land on the
    # lane axis with no wrapper-side transpose.  MXU, f32 accumulation.
    h1 = lax.dot_general(w1_ref[...], x,
                         dimension_numbers=(((1,), (1,)), ((), ())),
                         preferred_element_type=jnp.float32)
    h1 = h1.astype(ep_dtype)
    h1 = jnp.maximum(h1 + b1_ref[...].astype(ep_dtype), 0.0)  # (64, TILE_B)
    # Dropout(0.3): identity in eval mode.

    # Layer 2: Linear(64 -> 32) + ReLU.  (32, 64) @ (64, TILE_B) on the MXU.
    h2 = jnp.dot(w2_ref[...], h1.astype(jnp.bfloat16),
                 preferred_element_type=jnp.float32)
    h2 = h2.astype(ep_dtype)
    h2 = jnp.maximum(h2 + b2_ref[...].astype(ep_dtype), 0.0)  # (32, TILE_B)
    # Dropout(0.3): identity in eval mode.

    # Layer 3: Linear(32 -> 1) + Sigmoid.  N=1 matmul would waste the MXU, so
    # use a VPU multiply + XLU sublane-reduce in f32; result is lane-dense.
    logits = jnp.sum(h2.astype(jnp.float32) * w3_ref[...],
                     axis=0, keepdims=True) + b3_ref[...]     # (1, TILE_B) f32
    prob = 0.5 * (jnp.tanh(0.5 * logits) + 1.0)               # exact sigmoid, EUP
    o_ref[...] = prob.astype(o_ref.dtype)                     # lane-dense vst


def _round_up(n, m):
    return ((n + m - 1) // m) * m


def _default_epilogue_dtype():
    """bf16 epilogues on bf16-native VPUs (v6e/v7x); f32 elsewhere (v5e etc)."""
    try:
        kind = jax.devices()[0].device_kind.lower()
    except Exception:  # pragma: no cover - no device visible
        return jnp.float32
    return jnp.bfloat16 if ("v6" in kind or "v7" in kind) else jnp.float32


def mlp_forward(x, params, *, tile_b=8192, epilogue_dtype=None):
    """x: (B, 32) f32.  params: PyTorch-layout (W(out,in), b(out,)) triples."""
    w1, b1, w2, b2, w3, b3 = params
    B = x.shape[0]
    if epilogue_dtype is None:
        epilogue_dtype = _default_epilogue_dtype()

    # Cap the tile for v7x's 64 MiB per-TC VMEM; keep blocks (8,128)-aligned.
    tile_b = max(128, min(int(tile_b), 16384))
    tile_eff = min(_round_up(B, 128), _round_up(tile_b, 128))
    num_tiles = pl.cdiv(B, tile_eff)
    b_pad = num_tiles * tile_eff

    # Only pad rows when B is not a tile multiple; no transpose/cast pass here.
    if b_pad != B:
        x = jnp.pad(x, ((0, b_pad - B), (0, 0)))

    # MXU operands in bf16 (cast once, VMEM-resident via constant index_maps);
    # biases / last-layer weights stay f32 (cast in-kernel if epilogue is bf16).
    w1_bf = w1.astype(jnp.bfloat16)          # (64, 32)
    w2_bf = w2.astype(jnp.bfloat16)          # (32, 64)
    b1_c = b1.reshape(H1, 1)                 # columns broadcast across lanes
    b2_c = b2.reshape(H2, 1)
    w3_c = w3.reshape(H2, 1)
    b3_c = b3.reshape(1, 1)

    def const(shape):
        return pl.BlockSpec(shape, lambda i, _n=len(shape): (0,) * _n)

    kernel = functools.partial(mlp_kernel, ep_dtype=epilogue_dtype)

    out = pl.pallas_call(
        kernel,
        out_shape=jax.ShapeDtypeStruct((1, b_pad), jnp.float32),
        grid=(num_tiles,),
        in_specs=[
            pl.BlockSpec((tile_eff, INPUT_DIM), lambda i: (i, 0)),  # natural layout
            const(w1_bf.shape), const(b1_c.shape),
            const(w2_bf.shape), const(b2_c.shape),
            const(w3_c.shape), const(b3_c.shape),
        ],
        out_specs=pl.BlockSpec((1, tile_eff), lambda i: (0, i)),    # lane-dense
        compiler_params=pltpu.CompilerParams(
            dimension_semantics=("parallel",),   # megacore-shardable batch axis
            vmem_limit_bytes=48 << 20,           # headroom for 8K-16K row tiles
        ),
    )(x, w1_bf, b1_c, w2_bf, b2_c, w3_c, b3_c)

    return out[0, :B].reshape(B, OUT)


def init_params(key):
    """nn.Linear default init (uniform +/- 1/sqrt(fan_in)), PyTorch layout."""
    ks = jax.random.split(key, 6)

    def linear(kw, kb, fan_in, fan_out):
        bound = 1.0 / jnp.sqrt(fan_in)
        w = jax.random.uniform(kw, (fan_out, fan_in), jnp.float32, -bound, bound)
        b = jax.random.uniform(kb, (fan_out,), jnp.float32, -bound, bound)
        return w, b

    w1, b1 = linear(ks[0], ks[1], INPUT_DIM, H1)
    w2, b2 = linear(ks[2], ks[3], H1, H2)
    w3, b3 = linear(ks[4], ks[5], H2, OUT)
    return (w1, b1, w2, b2, w3, b3)


def mlp_reference(x, params):
    w1, b1, w2, b2, w3, b3 = params
    h1 = jnp.maximum(x @ w1.T + b1, 0.0)
    h2 = jnp.maximum(h1 @ w2.T + b2, 0.0)
    return jax.nn.sigmoid(h2 @ w3.T + b3)


if __name__ == "__main__":
    key = jax.random.PRNGKey(0)
    k_x, k_p = jax.random.split(key)

    B = 257  # small correctness shape; exercises a padded partial tile
    x = jax.random.normal(k_x, (B, INPUT_DIM), jnp.float32)
    params = init_params(k_p)
    ref = mlp_reference(x, params)

    # Default (large) tile -> single grid step for this small batch.
    out = jax.block_until_ready(mlp_forward(x, params))
    assert out.shape == (B, OUT)
    assert jnp.allclose(out, ref, atol=2e-2, rtol=2e-2), float(
        jnp.max(jnp.abs(out - ref)))

    # Multi-tile grid path (correctness check only, not a benchmark tile size).
    out_mt = jax.block_until_ready(mlp_forward(x, params, tile_b=256))
    assert jnp.allclose(out_mt, ref, atol=2e-2, rtol=2e-2), float(
        jnp.max(jnp.abs(out_mt - ref)))

    print("KERNEL_OK")
</pallas_src>

<mosaic_0001>
module attributes {stable_mosaic.version = 11 : i64} {
  func.func @mlp_kernel(%arg0: i32, %arg1: memref<384x32xf32, #tpu.memory_space<vmem>>, %arg2: memref<64x32xbf16, #tpu.memory_space<vmem>>, %arg3: memref<64x1xf32, #tpu.memory_space<vmem>>, %arg4: memref<32x64xbf16, #tpu.memory_space<vmem>>, %arg5: memref<32x1xf32, #tpu.memory_space<vmem>>, %arg6: memref<32x1xf32, #tpu.memory_space<vmem>>, %arg7: memref<1x1xf32, #tpu.memory_space<vmem>>, %arg8: memref<1x384xf32, #tpu.memory_space<vmem>>) attributes {dimension_semantics = [#tpu.dimension_semantics<parallel>], iteration_bounds = array<i64: 1>, scalar_prefetch = 0 : i64, scratch_operands = 0 : i64, tpu.core_type = #tpu.core_type<tc>, window_params = [{transform_indices = @transform_0, window_bounds = array<i64: 384, 32>}, {pipeline_mode = #tpu.pipeline_mode<synchronous>, transform_indices = @transform_1, window_bounds = array<i64: 64, 32>}, {pipeline_mode = #tpu.pipeline_mode<synchronous>, transform_indices = @transform_2, window_bounds = array<i64: 64, 1>}, {pipeline_mode = #tpu.pipeline_mode<synchronous>, transform_indices = @transform_3, window_bounds = array<i64: 32, 64>}, {pipeline_mode = #tpu.pipeline_mode<synchronous>, transform_indices = @transform_4, window_bounds = array<i64: 32, 1>}, {pipeline_mode = #tpu.pipeline_mode<synchronous>, transform_indices = @transform_5, window_bounds = array<i64: 32, 1>}, {pipeline_mode = #tpu.pipeline_mode<synchronous>, transform_indices = @transform_6, window_bounds = array<i64: 1, 1>}, {transform_indices = @transform_7, window_bounds = array<i64: 1, 384>}]} {
    %c0 = arith.constant 0 : index
    %c0_0 = arith.constant 0 : index
    %0 = vector.load %arg1[%c0, %c0_0] : memref<384x32xf32, #tpu.memory_space<vmem>>, vector<384x32xf32>
    %1 = arith.truncf %0 : vector<384x32xf32> to vector<384x32xbf16>
    %c0_1 = arith.constant 0 : index
    %c0_2 = arith.constant 0 : index
    %2 = vector.load %arg2[%c0_1, %c0_2] : memref<64x32xbf16, #tpu.memory_space<vmem>>, vector<64x32xbf16>
    %cst = arith.constant dense<0.000000e+00> : vector<64x384xf32>
    %3 = tpu.matmul %2, %1, %cst {dimension_numbers = #tpu.dot_dimension_numbers<[1], [1], [0], [0], [0, 0, 1, 0], [], []>} : vector<64x32xbf16>, vector<384x32xbf16>, vector<64x384xf32> -> vector<64x384xf32>
    %c0_3 = arith.constant 0 : index
    %c0_4 = arith.constant 0 : index
    %4 = vector.load %arg3[%c0_3, %c0_4] : memref<64x1xf32, #tpu.memory_space<vmem>>, vector<64x1xf32>
    %5 = vector.broadcast %4 : vector<64x1xf32> to vector<64x384xf32>
    %6 = arith.addf %3, %5 : vector<64x384xf32>
    %cst_5 = arith.constant 0.000000e+00 : f32
    %7 = vector.broadcast %cst_5 : f32 to vector<64x384xf32>
    %8 = arith.maximumf %6, %7 : vector<64x384xf32>
    %c0_6 = arith.constant 0 : index
    %c0_7 = arith.constant 0 : index
    %9 = vector.load %arg4[%c0_6, %c0_7] : memref<32x64xbf16, #tpu.memory_space<vmem>>, vector<32x64xbf16>
    %10 = arith.truncf %8 : vector<64x384xf32> to vector<64x384xbf16>
    %cst_8 = arith.constant dense<0.000000e+00> : vector<32x384xf32>
    %11 = tpu.matmul %9, %10, %cst_8 {dimension_numbers = #tpu.dot_dimension_numbers<[1], [0], [0], [1], [0, 0, 1, 1], [], []>} : vector<32x64xbf16>, vector<64x384xbf16>, vector<32x384xf32> -> vector<32x384xf32>
    %c0_9 = arith.constant 0 : index
    %c0_10 = arith.constant 0 : index
    %12 = vector.load %arg5[%c0_9, %c0_10] : memref<32x1xf32, #tpu.memory_space<vmem>>, vector<32x1xf32>
    %13 = vector.broadcast %12 : vector<32x1xf32> to vector<32x384xf32>
    %14 = arith.addf %11, %13 : vector<32x384xf32>
    %cst_11 = arith.constant 0.000000e+00 : f32
    %15 = vector.broadcast %cst_11 : f32 to vector<32x384xf32>
    %16 = arith.maximumf %14, %15 : vector<32x384xf32>
    %c0_12 = arith.constant 0 : index
    %c0_13 = arith.constant 0 : index
    %17 = vector.load %arg6[%c0_12, %c0_13] : memref<32x1xf32, #tpu.memory_space<vmem>>, vector<32x1xf32>
    %18 = vector.broadcast %17 : vector<32x1xf32> to vector<32x384xf32>
    %19 = arith.mulf %16, %18 : vector<32x384xf32>
    %cst_14 = arith.constant dense<0.000000e+00> : vector<384xf32>
    %20 = vector.multi_reduction <add>, %19, %cst_14 [0] : vector<32x384xf32> to vector<384xf32>
    %21 = vector.shape_cast %20 : vector<384xf32> to vector<1x384xf32>
    %c0_15 = arith.constant 0 : index
    %c0_16 = arith.constant 0 : index
    %22 = vector.load %arg7[%c0_15, %c0_16] : memref<1x1xf32, #tpu.memory_space<vmem>>, vector<1x1xf32>
    %23 = vector.broadcast %22 : vector<1x1xf32> to vector<1x384xf32>
    %24 = arith.addf %21, %23 : vector<1x384xf32>
    %cst_17 = arith.constant 5.000000e-01 : f32
    %25 = vector.broadcast %cst_17 : f32 to vector<1x384xf32>
    %26 = arith.mulf %25, %24 : vector<1x384xf32>
    %27 = math.tanh %26 : vector<1x384xf32>
    %cst_18 = arith.constant 1.000000e+00 : f32
    %28 = vector.broadcast %cst_18 : f32 to vector<1x384xf32>
    %29 = arith.addf %27, %28 : vector<1x384xf32>
    %cst_19 = arith.constant 5.000000e-01 : f32
    %30 = vector.broadcast %cst_19 : f32 to vector<1x384xf32>
    %31 = arith.mulf %30, %29 : vector<1x384xf32>
    %c0_20 = arith.constant 0 : index
    %c0_21 = arith.constant 0 : index
    %32 = vector.load %arg8[%c0_20, %c0_21] : memref<1x384xf32, #tpu.memory_space<vmem>>, vector<1x384xf32>
    tpu.vector_store %arg8[%c0_20, %c0_21], %31 {strides = array<i32>} : memref<1x384xf32, #tpu.memory_space<vmem>>, vector<1x384xf32>,
    return
  }
  func.func @transform_0(%arg0: i32) -> (i32, i32) {
    %c0_i32 = arith.constant 0 : i32
    %c0_i32_0 = arith.constant 0 : i32
    return %arg0, %c0_i32 : i32, i32
  }
  func.func @transform_1(%arg0: i32) -> (i32, i32) {
    %c0_i32 = arith.constant 0 : i32
    %c0_i32_0 = arith.constant 0 : i32
    %c0_i32_1 = arith.constant 0 : i32
    return %c0_i32, %c0_i32_0 : i32, i32
  }
  func.func @transform_2(%arg0: i32) -> (i32, i32) {
    %c0_i32 = arith.constant 0 : i32
    %c0_i32_0 = arith.constant 0 : i32
    %c0_i32_1 = arith.constant 0 : i32
    return %c0_i32, %c0_i32_0 : i32, i32
  }
  func.func @transform_3(%arg0: i32) -> (i32, i32) {
    %c0_i32 = arith.constant 0 : i32
    %c0_i32_0 = arith.constant 0 : i32
    %c0_i32_1 = arith.constant 0 : i32
    return %c0_i32, %c0_i32_0 : i32, i32
  }
  func.func @transform_4(%arg0: i32) -> (i32, i32) {
    %c0_i32 = arith.constant 0 : i32
    %c0_i32_0 = arith.constant 0 : i32
    %c0_i32_1 = arith.constant 0 : i32
    return %c0_i32, %c0_i32_0 : i32, i32
  }
  func.func @transform_5(%arg0: i32) -> (i32, i32) {
    %c0_i32 = arith.constant 0 : i32
    %c0_i32_0 = arith.constant 0 : i32
    %c0_i32_1 = arith.constant 0 : i32
    return %c0_i32, %c0_i32_0 : i32, i32
  }
  func.func @transform_6(%arg0: i32) -> (i32, i32) {
    %c0_i32 = arith.constant 0 : i32
    %c0_i32_0 = arith.constant 0 : i32
    %c0_i32_1 = arith.constant 0 : i32
    return %c0_i32, %c0_i32_0 : i32, i32
  }
  func.func @transform_7(%arg0: i32) -> (i32, i32) {
    %c0_i32 = arith.constant 0 : i32
    %c0_i32_0 = arith.constant 0 : i32
    return %c0_i32, %arg0 : i32, i32
  }
}

</mosaic_0001>

<llo_original>
// kernel: tpu_custom_call.1
$region0: #{tpu_custom_call.1}
  #allocation0 [shape = 'u32[]', space=smem, size = 0x4, offset = 0x4, fixed_abs, tag = 'smem constant byte address 0x4 - core index']
  #allocation1 [shape = 'u32[72,128]{1,0:T(1,128)}', space=vmem, size = 0x9000, scoped, tag = 'internal scratch']
  #allocation2 [shape = 'f32[1,1]{1,0:T(1,128)S(1)}', space=vmem, size = 0x200, scoped, tag = 'scoped memory for tpu_custom_call.1']
  %s0 = inlined_call_operand.vmem [shape: f32[384,32], index: 0, kind: input, shape index: {}]
  %s1 = inlined_call_operand.vmem [shape: bf16[64,32], index: 1, kind: input, shape index: {}]
  %s2 = inlined_call_operand.vmem [shape: f32[64,1], index: 2, kind: input, shape index: {}]
  %s3 = inlined_call_operand.vmem [shape: bf16[32,64], index: 3, kind: input, shape index: {}]
  %s4 = inlined_call_operand.vmem [shape: f32[32,1], index: 4, kind: input, shape index: {}]
  %s5 = inlined_call_operand.vmem [shape: f32[32,1], index: 5, kind: input, shape index: {}]
  %s6 = inlined_call_operand.<no memory space> [shape: f32[1,1], index: 6, kind: input, shape index: {}]
  %s7 = inlined_call_operand.hbm [shape: f32[1,384], index: 7, kind: output, shape index: {}]
  %s8 = sld [smem:[#allocation0]]
  $region38: #{tpu_custom_call.1} parent=0
    _
  %s10 = ssub.s32 1, %s8
  %s11 = scalar_select 0, %s10, %s8
  %v12 = vstv %s6
  %13 = vst [vmem:[#allocation2] sm:$0x1] %v12
  $region1: #{tpu_custom_call.1} parent=0
    #allocation3 [shape = 'u8[1536]{0}', space=vmem, size = 0x800, scoped, tag = 'output window, operand 0, single buffered']
    #allocation4 [shape = 's32[1]{0}', space=sflag, size = 0x4, scoped, tag = 'scoped memory for tpu_custom_call.1']
    %14 = vsyncpa [#allocation4], 0
    // Predicated region
    $region2: #{tpu_custom_call.1} parent=1 // pred_check
      _
    $region3: #{tpu_custom_call.1} parent=1 // pred_check_branch
      %16 = sbr.rel (0) target = $region5
    $region4: #{tpu_custom_call.1} parent=1 // pred_region
      _
    $region5: #{tpu_custom_call.1} parent=1 // pred_fallthru
      _
    // Predicated region
    $region6: #{tpu_custom_call.1} parent=1 // pred_check
      _
    $region7: #{tpu_custom_call.1} parent=1 // pred_check_branch
      %18 = sbr.rel (0) target = $region9
    $region8: #{tpu_custom_call.1} parent=1 // pred_region
      _
    $region9: #{tpu_custom_call.1} parent=1 // pred_fallthru
      _
    // Predicated region
    $region10: #{tpu_custom_call.1} parent=1 // pred_check
      _
    $region11: #{tpu_custom_call.1} parent=1 // pred_check_branch
      %20 = sbr.rel (0) target = $region13
    $region12: #{tpu_custom_call.1} parent=1 // pred_region
      _
    $region13: #{tpu_custom_call.1} parent=1 // pred_fallthru
      _
    // Predicated region
    $region14: #{tpu_custom_call.1} parent=1 // pred_check
      _
    $region15: #{tpu_custom_call.1} parent=1 // pred_check_branch
      %22 = sbr.rel (0) target = $region17
    $region16: #{tpu_custom_call.1} parent=1 // pred_region
      _
    $region17: #{tpu_custom_call.1} parent=1 // pred_fallthru
      _
    // Predicated region
    $region18: #{tpu_custom_call.1} parent=1 // pred_check
      _
    $region19: #{tpu_custom_call.1} parent=1 // pred_check_branch
      %24 = sbr.rel (0) target = $region21
    $region20: #{tpu_custom_call.1} parent=1 // pred_region
      _
    $region21: #{tpu_custom_call.1} parent=1 // pred_fallthru
      _
    // Predicated region
    $region22: #{tpu_custom_call.1} parent=1 // pred_check
      _
    $region23: #{tpu_custom_call.1} parent=1 // pred_check_branch
      %26 = sbr.rel (0) target = $region25
    $region24: #{tpu_custom_call.1} parent=1 // pred_region
      _
    $region25: #{tpu_custom_call.1} parent=1 // pred_fallthru
      _
    // Predicated region
    $region26: #{tpu_custom_call.1} parent=1 // pred_check
      _
    $region27: #{tpu_custom_call.1} parent=1 // pred_check_branch
      %28 = sbr.rel (0) target = $region29
    $region28: #{tpu_custom_call.1} parent=1 // pred_region
      _
    $region29: #{tpu_custom_call.1} parent=1 // pred_fallthru
      _
    %v30 = vld [vmem:[%s0] sm:$0xff]
    %v31 = vld [vmem:[%s0 + $0x8] sm:$0xff]
    %v32 = vld [vmem:[%s0 + $0x10] sm:$0xff]
    %v33 = vld [vmem:[%s0 + $0x18] sm:$0xff]
    %v34 = vld [vmem:[%s0 + $0x20] sm:$0xff]
    %v35 = vld [vmem:[%s0 + $0x28] sm:$0xff]
    %v36 = vld [vmem:[%s0 + $0x30] sm:$0xff]
    %v37 = vld [vmem:[%s0 + $0x38] sm:$0xff]
    %v38 = vld [vmem:[%s0 + $0x40] sm:$0xff]
    %v39 = vld [vmem:[%s0 + $0x48] sm:$0xff]
    %v40 = vld [vmem:[%s0 + $0x50] sm:$0xff]
    %v41 = vld [vmem:[%s0 + $0x58] sm:$0xff]
    %v42 = vld [vmem:[%s0 + $0x60] sm:$0xff]
    %v43 = vld [vmem:[%s0 + $0x68] sm:$0xff]
    %v44 = vld [vmem:[%s0 + $0x70] sm:$0xff]
    %v45 = vld [vmem:[%s0 + $0x78] sm:$0xff]
    %v46 = vld [vmem:[%s0 + $0x80] sm:$0xff]
    %v47 = vld [vmem:[%s0 + $0x88] sm:$0xff]
    %v48 = vld [vmem:[%s0 + $0x90] sm:$0xff]
    %v49 = vld [vmem:[%s0 + $0x98] sm:$0xff]
    %v50 = vld [vmem:[%s0 + $0xa0] sm:$0xff]
    %v51 = vld [vmem:[%s0 + $0xa8] sm:$0xff]
    %v52 = vld [vmem:[%s0 + $0xb0] sm:$0xff]
    %v53 = vld [vmem:[%s0 + $0xb8] sm:$0xff]
    %v54 = vld [vmem:[%s0 + $0xc0] sm:$0xff]
    %v55 = vld [vmem:[%s0 + $0xc8] sm:$0xff]
    %v56 = vld [vmem:[%s0 + $0xd0] sm:$0xff]
    %v57 = vld [vmem:[%s0 + $0xd8] sm:$0xff]
    %v58 = vld [vmem:[%s0 + $0xe0] sm:$0xff]
    %v59 = vld [vmem:[%s0 + $0xe8] sm:$0xff]
    %v60 = vld [vmem:[%s0 + $0xf0] sm:$0xff]
    %v61 = vld [vmem:[%s0 + $0xf8] sm:$0xff]
    %v62 = vld [vmem:[%s0 + $0x100] sm:$0xff]
    %v63 = vld [vmem:[%s0 + $0x108] sm:$0xff]
    %v64 = vld [vmem:[%s0 + $0x110] sm:$0xff]
    %v65 = vld [vmem:[%s0 + $0x118] sm:$0xff]
    %v66 = vld [vmem:[%s0 + $0x120] sm:$0xff]
    %v67 = vld [vmem:[%s0 + $0x128] sm:$0xff]
    %v68 = vld [vmem:[%s0 + $0x130] sm:$0xff]
    %v69 = vld [vmem:[%s0 + $0x138] sm:$0xff]
    %v70 = vld [vmem:[%s0 + $0x140] sm:$0xff]
    %v71 = vld [vmem:[%s0 + $0x148] sm:$0xff]
    %v72 = vld [vmem:[%s0 + $0x150] sm:$0xff]
    %v73 = vld [vmem:[%s0 + $0x158] sm:$0xff]
    %v74 = vld [vmem:[%s0 + $0x160] sm:$0xff]
    %v75 = vld [vmem:[%s0 + $0x168] sm:$0xff]
    %v76 = vld [vmem:[%s0 + $0x170] sm:$0xff]
    %v77 = vld [vmem:[%s0 + $0x178] sm:$0xff]
    %v78 = vpack.c.bf16 %v31, %v30
    %v79 = vpack.c.bf16 %v33, %v32
    %v80 = vpack.c.bf16 %v35, %v34
    %v81 = vpack.c.bf16 %v37, %v36
    %v82 = vpack.c.bf16 %v39, %v38
    %v83 = vpack.c.bf16 %v41, %v40
    %v84 = vpack.c.bf16 %v43, %v42
    %v85 = vpack.c.bf16 %v45, %v44
    %v86 = vpack.c.bf16 %v47, %v46
    %v87 = vpack.c.bf16 %v49, %v48
    %v88 = vpack.c.bf16 %v51, %v50
    %v89 = vpack.c.bf16 %v53, %v52
    %v90 = vpack.c.bf16 %v55, %v54
    %v91 = vpack.c.bf16 %v57, %v56
    %v92 = vpack.c.bf16 %v59, %v58
    %v93 = vpack.c.bf16 %v61, %v60
    %v94 = vpack.c.bf16 %v63, %v62
    %v95 = vpack.c.bf16 %v65, %v64
    %v96 = vpack.c.bf16 %v67, %v66
    %v97 = vpack.c.bf16 %v69, %v68
    %v98 = vpack.c.bf16 %v71, %v70
    %v99 = vpack.c.bf16 %v73, %v72
    %v100 = vpack.c.bf16 %v75, %v74
    %v101 = vpack.c.bf16 %v77, %v76
    %v102 = vld [vmem:[%s1] sm:$0xf]
    %v103 = vld [vmem:[%s1 + $0x4] sm:$0xf]
    %v104 = vld [vmem:[%s1 + $0x8] sm:$0xf]
    %v105 = vld [vmem:[%s1 + $0xc] sm:$0xf]
    %v106 = vld [vmem:[%s1 + $0x10] sm:$0xf]
    %v107 = vld [vmem:[%s1 + $0x14] sm:$0xf]
    %v108 = vld [vmem:[%s1 + $0x18] sm:$0xf]
    %v109 = vld [vmem:[%s1 + $0x1c] sm:$0xf]
    %v110 = vld [vmem:[%s2] sm:$0xff]
    %v111 = vld [vmem:[%s2 + $0x8] sm:$0xff]
    %v112 = vld [vmem:[%s2 + $0x10] sm:$0xff]
    %v113 = vld [vmem:[%s2 + $0x18] sm:$0xff]
    %v114 = vld [vmem:[%s2 + $0x20] sm:$0xff]
    %v115 = vld [vmem:[%s2 + $0x28] sm:$0xff]
    %v116 = vld [vmem:[%s2 + $0x30] sm:$0xff]
    %v117 = vld [vmem:[%s2 + $0x38] sm:$0xff]
    %119 = vset.pattern.permute.xlu0 0
    %120 = vperm.xlu0 %119, %v110
    %v121 = vpop.permute.xlu0 %120
    %124 = vset.pattern.permute.xlu0 0
    %125 = vperm.xlu0 %124, %v111
    %v126 = vpop.permute.xlu0 %125
    %129 = vset.pattern.permute.xlu0 0
    %130 = vperm.xlu0 %129, %v112
    %v131 = vpop.permute.xlu0 %130
    %134 = vset.pattern.permute.xlu0 0
    %135 = vperm.xlu0 %134, %v113
    %v136 = vpop.permute.xlu0 %135
    %139 = vset.pattern.permute.xlu0 0
    %140 = vperm.xlu0 %139, %v114
    %v141 = vpop.permute.xlu0 %140
    %144 = vset.pattern.permute.xlu0 0
    %145 = vperm.xlu0 %144, %v115
    %v146 = vpop.permute.xlu0 %145
    %149 = vset.pattern.permute.xlu0 0
    %150 = vperm.xlu0 %149, %v116
    %v151 = vpop.permute.xlu0 %150
    %154 = vset.pattern.permute.xlu0 0
    %155 = vperm.xlu0 %154, %v117
    %v156 = vpop.permute.xlu0 %155
    %v166 = vunpack.c.l.b16 %v102
    %v167 = vunpack.c.l.b16 %v103
    %v168 = vunpack.c.l.b16 %v104
    %v169 = vunpack.c.l.b16 %v105
    %v170 = vunpack.c.l.b16 %v106
    %v171 = vunpack.c.l.b16 %v107
    %v172 = vunpack.c.l.b16 %v108
    %v173 = vunpack.c.l.b16 %v109
    %v174 = vpack.c.b16 %v167, %v166
    %v175 = vpack.c.b16 %v169, %v168
    %v176 = vpack.c.b16 %v171, %v170
    %v177 = vpack.c.b16 %v173, %v172
    %vm178 = vcmask 261120
    %v180 = vsel %vm178, %v174, 0
    %v183 = vsel %vm178, %v175, 0
    %v186 = vsel %vm178, %v176, 0
    %v189 = vsel %vm178, %v177, 0
    %v192 = vsel %vm178, %v78, 0
    %v195 = vsel %vm178, %v79, 0
    %v198 = vsel %vm178, %v80, 0
    %v201 = vsel %vm178, %v81, 0
    %v204 = vsel %vm178, %v82, 0
    %v207 = vsel %vm178, %v83, 0
    %v210 = vsel %vm178, %v84, 0
    %v213 = vsel %vm178, %v85, 0
    %v216 = vsel %vm178, %v86, 0
    %v219 = vsel %vm178, %v87, 0
    %v222 = vsel %vm178, %v88, 0
    %v225 = vsel %vm178, %v89, 0
    %v228 = vsel %vm178, %v90, 0
    %v231 = vsel %vm178, %v91, 0
    %v234 = vsel %vm178, %v92, 0
    %v237 = vsel %vm178, %v93, 0
    %v240 = vsel %vm178, %v94, 0
    %v243 = vsel %vm178, %v95, 0
    %v246 = vsel %vm178, %v96, 0
    %v249 = vsel %vm178, %v97, 0
    %v252 = vsel %vm178, %v98, 0
    %v255 = vsel %vm178, %v99, 0
    %v258 = vsel %vm178, %v100, 0
    %v261 = vsel %vm178, %v101, 0
    %263 = vmatpush.bf16.xpose.msra.mxu0 %v213
    %264 = vmatpush.bf16.xpose.msra.mxu0 %v210
    %265 = vmatpush.bf16.xpose.msra.mxu0 %v207
    %266 = vmatpush.bf16.xpose.msra.mxu0 %v204
    %267 = vmatpush.bf16.xpose.msra.mxu0 %v201
    %268 = vmatpush.bf16.xpose.msra.mxu0 %v198
    %269 = vmatpush.bf16.xpose.msra.mxu0 %v195
    %270 = vmatpush.bf16.xpose.msra.mxu0 %v192
    %271 = vmatmul.bf16.gmra.mxu0 %v180
    %v272 = vpop.f32.mrf.mxu0
    %v273 = vadd.f32 %v121, %v272
    %v274 = vpop.f32.mrf.mxu0
    %v275 = vadd.f32 %v126, %v274
    %276 = vmatmul.bf16.gmra.mxu0 %v183
    %v277 = vpop.f32.mrf.mxu0
    %v278 = vadd.f32 %v131, %v277
    %v279 = vpop.f32.mrf.mxu0
    %v280 = vadd.f32 %v136, %v279
    %281 = vmatmul.bf16.gmra.mxu0 %v186
    %v282 = vpop.f32.mrf.mxu0
    %v283 = vadd.f32 %v141, %v282
    %v284 = vpop.f32.mrf.mxu0
    %v285 = vadd.f32 %v146, %v284
    %286 = vmatmul.bf16.gmra.mxu0 %v189
    %v287 = vpop.f32.mrf.mxu0
    %v288 = vadd.f32 %v151, %v287
    %v289 = vpop.f32.mrf.mxu0
    %v290 = vadd.f32 %v156, %v289
    %291 = vdwg.mxu0
    %292 = vmatpush.bf16.xpose.msra.mxu0 %v237
    %293 = vmatpush.bf16.xpose.msra.mxu0 %v234
    %294 = vmatpush.bf16.xpose.msra.mxu0 %v231
    %295 = vmatpush.bf16.xpose.msra.mxu0 %v228
    %296 = vmatpush.bf16.xpose.msra.mxu0 %v225
    %297 = vmatpush.bf16.xpose.msra.mxu0 %v222
    %298 = vmatpush.bf16.xpose.msra.mxu0 %v219
    %299 = vmatpush.bf16.xpose.msra.mxu0 %v216
    %300 = vmatmul.bf16.gmra.mxu0 %v180
    %v301 = vpop.f32.mrf.mxu0
    %v302 = vadd.f32 %v121, %v301
    %v303 = vpop.f32.mrf.mxu0
    %v304 = vadd.f32 %v126, %v303
    %305 = vmatmul.bf16.gmra.mxu0 %v183
    %v306 = vpop.f32.mrf.mxu0
    %v307 = vadd.f32 %v131, %v306
    %v308 = vpop.f32.mrf.mxu0
    %v309 = vadd.f32 %v136, %v308
    %310 = vmatmul.bf16.gmra.mxu0 %v186
    %v311 = vpop.f32.mrf.mxu0
    %v312 = vadd.f32 %v141, %v311
    %v313 = vpop.f32.mrf.mxu0
    %v314 = vadd.f32 %v146, %v313
    %315 = vmatmul.bf16.gmra.mxu0 %v189
    %v316 = vpop.f32.mrf.mxu0
    %v317 = vadd.f32 %v151, %v316
    %v318 = vpop.f32.mrf.mxu0
    %v319 = vadd.f32 %v156, %v318
    %320 = vdwg.mxu0
    %321 = vmatpush.bf16.xpose.msra.mxu0 %v261
    %322 = vmatpush.bf16.xpose.msra.mxu0 %v258
    %323 = vmatpush.bf16.xpose.msra.mxu0 %v255
    %324 = vmatpush.bf16.xpose.msra.mxu0 %v252
    %325 = vmatpush.bf16.xpose.msra.mxu0 %v249
    %326 = vmatpush.bf16.xpose.msra.mxu0 %v246
    %327 = vmatpush.bf16.xpose.msra.mxu0 %v243
    %328 = vmatpush.bf16.xpose.msra.mxu0 %v240
    %329 = vmatmul.bf16.gmra.mxu0 %v180
    %v330 = vpop.f32.mrf.mxu0
    %v331 = vadd.f32 %v121, %v330
    %v332 = vpop.f32.mrf.mxu0
    %v333 = vadd.f32 %v126, %v332
    %334 = vmatmul.bf16.gmra.mxu0 %v183
    %v335 = vpop.f32.mrf.mxu0
    %v336 = vadd.f32 %v131, %v335
    %v337 = vpop.f32.mrf.mxu0
    %v338 = vadd.f32 %v136, %v337
    %339 = vmatmul.bf16.gmra.mxu0 %v186
    %v340 = vpop.f32.mrf.mxu0
    %v341 = vadd.f32 %v141, %v340
    %v342 = vpop.f32.mrf.mxu0
    %v343 = vadd.f32 %v146, %v342
    %344 = vmatmul.bf16.gmra.mxu0 %v189
    %v345 = vpop.f32.mrf.mxu0
    %v346 = vadd.f32 %v151, %v345
    %v347 = vpop.f32.mrf.mxu0
    %v348 = vadd.f32 %v156, %v347
    %349 = vdwg.mxu0
    %v350 = vmax.f32 %v273, 0.0
    %v351 = vmax.f32 %v302, 0.0
    %v352 = vmax.f32 %v331, 0.0
    %v353 = vmax.f32 %v275, 0.0
    %v354 = vmax.f32 %v304, 0.0
    %v355 = vmax.f32 %v333, 0.0
    %v356 = vmax.f32 %v278, 0.0
    %v357 = vmax.f32 %v307, 0.0
    %v358 = vmax.f32 %v336, 0.0
    %v359 = vmax.f32 %v280, 0.0
    %v360 = vmax.f32 %v309, 0.0
    %v361 = vmax.f32 %v338, 0.0
    %v362 = vmax.f32 %v283, 0.0
    %v363 = vmax.f32 %v312, 0.0
    %v364 = vmax.f32 %v341, 0.0
    %v365 = vmax.f32 %v285, 0.0
    %v366 = vmax.f32 %v314, 0.0
    %v367 = vmax.f32 %v343, 0.0
    %v368 = vmax.f32 %v288, 0.0
    %v369 = vmax.f32 %v317, 0.0
    %v370 = vmax.f32 %v346, 0.0
    %v371 = vmax.f32 %v290, 0.0
    %v372 = vmax.f32 %v319, 0.0
    %v373 = vmax.f32 %v348, 0.0
    %v374 = vld [vmem:[%s3] sm:$0xf]
    %v375 = vld [vmem:[%s3 + $0x4] sm:$0xf]
    %v376 = vld [vmem:[%s3 + $0x8] sm:$0xf]
    %v377 = vld [vmem:[%s3 + $0xc] sm:$0xf]
    %v378 = vpack.c.bf16 %v353, %v350
    %v379 = vpack.c.bf16 %v354, %v351
    %v380 = vpack.c.bf16 %v355, %v352
    %v381 = vpack.c.bf16 %v359, %v356
    %v382 = vpack.c.bf16 %v360, %v357
    %v383 = vpack.c.bf16 %v361, %v358
    %v384 = vpack.c.bf16 %v365, %v362
    %v385 = vpack.c.bf16 %v366, %v363
    %v386 = vpack.c.bf16 %v367, %v364
    %v387 = vpack.c.bf16 %v371, %v368
    %v388 = vpack.c.bf16 %v372, %v369
    %v389 = vpack.c.bf16 %v373, %v370
    %v390 = vld [vmem:[%s4] sm:$0xff]
    %v391 = vld [vmem:[%s4 + $0x8] sm:$0xff]
    %v392 = vld [vmem:[%s4 + $0x10] sm:$0xff]
    %v393 = vld [vmem:[%s4 + $0x18] sm:$0xff]
    %395 = vset.pattern.permute.xlu0 0
    %396 = vperm.xlu0 %395, %v390
    %v397 = vpop.permute.xlu0 %396
    %400 = vset.pattern.permute.xlu0 0
    %401 = vperm.xlu0 %400, %v391
    %v402 = vpop.permute.xlu0 %401
    %405 = vset.pattern.permute.xlu0 0
    %406 = vperm.xlu0 %405, %v392
    %v407 = vpop.permute.xlu0 %406
    %410 = vset.pattern.permute.xlu0 0
    %411 = vperm.xlu0 %410, %v393
    %v412 = vpop.permute.xlu0 %411
    %v418 = vunpack.c.l.b16 %v374
    %v419 = vunpack.c.l.b16 %v375
    %v420 = vunpack.c.l.b16 %v376
    %v421 = vunpack.c.l.b16 %v377
    %v422 = vpack.c.b16 %v419, %v418
    %v423 = vpack.c.b16 %v421, %v420
    %vm424 = vcmask 523264
    %v426 = vsel %vm424, %v422, 0
    %v429 = vsel %vm424, %v423, 0
    %431 = vmatpush.bf16.msra.mxu0 0
    %432 = vmatpush.bf16.msra.mxu0 0
    %433 = vmatpush.bf16.msra.mxu0 0
    %434 = vmatpush.bf16.msra.mxu0 0
    %435 = vmatpush.bf16.msra.mxu0 %v387
    %436 = vmatpush.bf16.msra.mxu0 %v384
    %437 = vmatpush.bf16.msra.mxu0 %v381
    %438 = vmatpush.bf16.msra.mxu0 %v378
    %439 = vmatmul.bf16.gmra.mxu0 %v426
    %v440 = vpop.f32.mrf.mxu0
    %v441 = vadd.f32 %v397, %v440
    %v442 = vpop.f32.mrf.mxu0
    %v443 = vadd.f32 %v402, %v442
    %444 = vmatmul.bf16.gmra.mxu0 %v429
    %v445 = vpop.f32.mrf.mxu0
    %v446 = vadd.f32 %v407, %v445
    %v447 = vpop.f32.mrf.mxu0
    %v448 = vadd.f32 %v412, %v447
    %449 = vdwg.mxu0
    %450 = vmatpush.bf16.msra.mxu0 0
    %451 = vmatpush.bf16.msra.mxu0 0
    %452 = vmatpush.bf16.msra.mxu0 0
    %453 = vmatpush.bf16.msra.mxu0 0
    %454 = vmatpush.bf16.msra.mxu0 %v388
    %455 = vmatpush.bf16.msra.mxu0 %v385
    %456 = vmatpush.bf16.msra.mxu0 %v382
    %457 = vmatpush.bf16.msra.mxu0 %v379
    %458 = vmatmul.bf16.gmra.mxu0 %v426
    %v459 = vpop.f32.mrf.mxu0
    %v460 = vadd.f32 %v397, %v459
    %v461 = vpop.f32.mrf.mxu0
    %v462 = vadd.f32 %v402, %v461
    %463 = vmatmul.bf16.gmra.mxu0 %v429
    %v464 = vpop.f32.mrf.mxu0
    %v465 = vadd.f32 %v407, %v464
    %v466 = vpop.f32.mrf.mxu0
    %v467 = vadd.f32 %v412, %v466
    %468 = vdwg.mxu0
    %469 = vmatpush.bf16.msra.mxu0 0
    %470 = vmatpush.bf16.msra.mxu0 0
    %471 = vmatpush.bf16.msra.mxu0 0
    %472 = vmatpush.bf16.msra.mxu0 0
    %473 = vmatpush.bf16.msra.mxu0 %v389
    %474 = vmatpush.bf16.msra.mxu0 %v386
    %475 = vmatpush.bf16.msra.mxu0 %v383
    %476 = vmatpush.bf16.msra.mxu0 %v380
    %477 = vmatmul.bf16.gmra.mxu0 %v426
    %v478 = vpop.f32.mrf.mxu0
    %v479 = vadd.f32 %v397, %v478
    %v480 = vpop.f32.mrf.mxu0
    %v481 = vadd.f32 %v402, %v480
    %482 = vmatmul.bf16.gmra.mxu0 %v429
    %v483 = vpop.f32.mrf.mxu0
    %v484 = vadd.f32 %v407, %v483
    %v485 = vpop.f32.mrf.mxu0
    %v486 = vadd.f32 %v412, %v485
    %487 = vdwg.mxu0
    %v488 = vmax.f32 %v441, 0.0
    %v489 = vmax.f32 %v460, 0.0
    %v490 = vmax.f32 %v479, 0.0
    %v491 = vmax.f32 %v443, 0.0
    %v492 = vmax.f32 %v462, 0.0
    %v493 = vmax.f32 %v481, 0.0
    %v494 = vmax.f32 %v446, 0.0
    %v495 = vmax.f32 %v465, 0.0
    %v496 = vmax.f32 %v484, 0.0
    %v497 = vmax.f32 %v448, 0.0
    %v498 = vmax.f32 %v467, 0.0
    %v499 = vmax.f32 %v486, 0.0
    %v500 = vld [vmem:[%s5] sm:$0xff]
    %v501 = vld [vmem:[%s5 + $0x8] sm:$0xff]
    %v502 = vld [vmem:[%s5 + $0x10] sm:$0xff]
    %v503 = vld [vmem:[%s5 + $0x18] sm:$0xff]
    %505 = vset.pattern.permute.xlu0 0
    %506 = vperm.xlu0 %505, %v500
    %v507 = vpop.permute.xlu0 %506
    %510 = vset.pattern.permute.xlu0 0
    %511 = vperm.xlu0 %510, %v501
    %v512 = vpop.permute.xlu0 %511
    %515 = vset.pattern.permute.xlu0 0
    %516 = vperm.xlu0 %515, %v502
    %v517 = vpop.permute.xlu0 %516
    %520 = vset.pattern.permute.xlu0 0
    %521 = vperm.xlu0 %520, %v503
    %v522 = vpop.permute.xlu0 %521
    %v524 = vmul.f32 %v488, %v507
    %v525 = vmul.f32 %v489, %v507
    %v526 = vmul.f32 %v490, %v507
    %v527 = vmul.f32 %v491, %v512
    %v528 = vmul.f32 %v492, %v512
    %v529 = vmul.f32 %v493, %v512
    %v530 = vmul.f32 %v494, %v517
    %v531 = vmul.f32 %v495, %v517
    %v532 = vmul.f32 %v496, %v517
    %v533 = vmul.f32 %v497, %v522
    %v534 = vmul.f32 %v498, %v522
    %v535 = vmul.f32 %v499, %v522
    %v536 = vadd.f32 %v524, %v527
    %v537 = vadd.f32 %v536, %v530
    %v538 = vadd.f32 %v537, %v533
    %v539 = vrot.slane %v538, 4
    %v540 = vadd.f32 %v538, %v539
    %v541 = vrot.slane %v540, 2
    %v542 = vadd.f32 %v540, %v541
    %v543 = vrot.slane %v542, 1
    %v544 = vadd.f32 %v542, %v543
    %v545 = vadd.f32 %v525, %v528
    %v546 = vadd.f32 %v545, %v531
    %v547 = vadd.f32 %v546, %v534
    %v548 = vrot.slane %v547, 4
    %v549 = vadd.f32 %v547, %v548
    %v550 = vrot.slane %v549, 2
    %v551 = vadd.f32 %v549, %v550
    %v552 = vrot.slane %v551, 1
    %v553 = vadd.f32 %v551, %v552
    %v554 = vadd.f32 %v526, %v529
    %v555 = vadd.f32 %v554, %v532
    %v556 = vadd.f32 %v555, %v535
    %v557 = vrot.slane %v556, 4
    %v558 = vadd.f32 %v556, %v557
    %v559 = vrot.slane %v558, 2
    %v560 = vadd.f32 %v558, %v559
    %v561 = vrot.slane %v560, 1
    %v562 = vadd.f32 %v560, %v561
    %v563 = vld [vmem:[#allocation2] sm:$0x1]
    %565 = vset.pattern.permute.xlu0 0
    %566 = vperm.xlu0 %565, %v563
    %v567 = vpop.permute.xlu0 %566
    %v569 = vperm.slane %v567, 0
    %v570 = vadd.f32 %v544, %v569
    %v571 = vadd.f32 %v553, %v569
    %v572 = vadd.f32 %v562, %v569
    %v573 = vmul.f32 %v570, 0.5
    %v574 = vmul.f32 %v571, 0.5
    %v575 = vmul.f32 %v572, 0.5
    %v576 = vtanh.pop %v573
    %v577 = vtanh.pop %v574
    %v578 = vtanh.pop %v575
    %v579 = vadd.f32 %v576, 1.0
    %v580 = vadd.f32 %v577, 1.0
    %v581 = vadd.f32 %v578, 1.0
    %v582 = vmul.f32 %v579, 0.5
    %v583 = vmul.f32 %v580, 0.5
    %v584 = vmul.f32 %v581, 0.5
    %v588 = vrot.slane %v583, 7
    %v589 = vrot.slane %v584, 6
    %vm590 = vcmask 1040384
    %v591 = vsel %vm590, %v582, %v588
    %vm592 = vcmask 1041408
    %v593 = vsel %vm592, %v591, %v589
    %v595 = vlaneseq
    %vm596 = vcmp.ge.s32.totalorder %v595, 0
    %vm597 = vcmp.lt.s32.totalorder %v595, 384
    %vm598 = vmand %vm596, %vm597
    %599 = vst.msk [vmem:[#allocation3] sm:$0x7] %vm598, %v593
    // Predicated region
    $region30: #{tpu_custom_call.1} parent=1 // pred_check
      _
    $region31: #{tpu_custom_call.1} parent=1 // pred_check_branch
      %601 = sbr.rel (0) target = $region33
    $region32: #{tpu_custom_call.1} parent=1 // pred_region
      %603 = vsyncadd [#allocation4], 0
      %s605 = sshll.u32 [#allocation3], 4
      %s606 = int_to_ptr.vmem [resolvable:$true] %s605
      %s607 = sshll.u32 %s7, 4
      %s608 = int_to_ptr.hbm [resolvable:$true] %s607
      %610 = dma.vmem_to_hbm [thread:$0]  %s606, 48, %s608, [#allocation4]
    $region33: #{tpu_custom_call.1} parent=1 // pred_fallthru
      _
    // Predicated region
    $region34: #{tpu_custom_call.1} parent=1 // pred_check
      _
    $region35: #{tpu_custom_call.1} parent=1 // pred_check_branch
      %612 = sbr.rel (0) target = $region37
    $region36: #{tpu_custom_call.1} parent=1 // pred_region
      %614 = dma.done [#allocation4], 48
    $region37: #{tpu_custom_call.1} parent=1 // pred_fallthru
      _
    %615 = vsyncpa [#allocation4], 1

</llo_original>
